<compile_context>
chip_gen: v5e
topology: v5e:2x2
jax: 0.10.0
libtpu: 0.0.40
codegen_flags: <defaults>
</compile_context>

<pallas_src>
import functools

import jax
import jax.numpy as jnp
from jax.experimental import pallas as pl
from jax.experimental.pallas import tpu as pltpu

IN_FEATURES = 3
OUT_FEATURES = 1
SUBLANE = 8


def _round_up(a, b):
    return ((a + b - 1) // b) * b


def linear_kernel(x_ref, w_ref, b_ref, o_ref):
    # x_ref: (tile_n, 3) VMEM; w_ref: (3,) SMEM; b_ref: (1,) SMEM
    # o_ref: (tile_n, 1) VMEM
    x0 = x_ref[:, 0:1]
    x1 = x_ref[:, 1:2]
    x2 = x_ref[:, 2:3]
    acc = x0 * w_ref[0] + x1 * w_ref[1] + x2 * w_ref[2] + b_ref[0]
    o_ref[...] = acc.astype(o_ref.dtype)


def linear_forward(x, w, b, *, tile_n=2048):
    """y = x @ W^T + b for x:(N,3), w:(1,3), b:(1,) -> (N,1)."""
    n = x.shape[0]

    # Row tile: multiple of 8 sublanes, no larger than needed.
    n8 = _round_up(n, SUBLANE)
    tr = min(_round_up(max(tile_n, SUBLANE), SUBLANE), n8)

    # Prefer >= 2 grid tiles (when N allows) so the "parallel" grid axis can be
    # sharded across both TensorCores on v7x; neutral on v5e/v6e.
    if n8 >= 2 * SUBLANE and pl.cdiv(n, tr) < 2:
        tr = max(SUBLANE, _round_up(pl.cdiv(n8, 2), SUBLANE))

    num_tiles = pl.cdiv(n, tr)

    w_flat = w.reshape(IN_FEATURES).astype(jnp.float32)   # SMEM scalars
    b_flat = b.reshape(OUT_FEATURES).astype(jnp.float32)

    return pl.pallas_call(
        linear_kernel,
        out_shape=jax.ShapeDtypeStruct((n, OUT_FEATURES), x.dtype),
        grid=(num_tiles,),
        in_specs=[
            # Last dim (3) equals the full array dim -> block shape is legal;
            # ragged last row-block is handled by Pallas (OOB writes dropped).
            pl.BlockSpec((tr, IN_FEATURES), lambda i: (i, 0)),
            pl.BlockSpec(memory_space=pltpu.MemorySpace.SMEM),
            pl.BlockSpec(memory_space=pltpu.MemorySpace.SMEM),
        ],
        out_specs=pl.BlockSpec((tr, OUT_FEATURES), lambda i: (i, 0)),
        compiler_params=pltpu.CompilerParams(
            dimension_semantics=("parallel",),
        ),
    )(x, w_flat, b_flat)


if __name__ == "__main__":
    key = jax.random.PRNGKey(0)
    kx, kw, kb = jax.random.split(key, 3)

    # Deterministic params mimicking torch nn.Linear default init:
    # U(-1/sqrt(in_features), 1/sqrt(in_features))
    bound = 1.0 / jnp.sqrt(jnp.float32(IN_FEATURES))
    w = jax.random.uniform(kw, (OUT_FEATURES, IN_FEATURES),
                           minval=-bound, maxval=bound, dtype=jnp.float32)
    b = jax.random.uniform(kb, (OUT_FEATURES,),
                           minval=-bound, maxval=bound, dtype=jnp.float32)

    fwd = jax.jit(functools.partial(linear_forward))

    # Small batch of inputs, (N, 3)
    x = jax.random.normal(kx, (8, IN_FEATURES), dtype=jnp.float32)
    out = jax.block_until_ready(fwd(x, w, b))

    ref = x @ w.T + b
    assert out.shape == (8, OUT_FEATURES)
    assert jnp.allclose(out, ref, atol=1e-5, rtol=1e-5)

    # Larger batch exercising multiple grid tiles and a ragged last block
    # (5000 rows, tile 2048 -> 3 tiles, last one partial).
    xl = jax.random.normal(kx, (5000, IN_FEATURES), dtype=jnp.float32)
    outl = jax.block_until_ready(fwd(xl, w, b))
    refl = xl @ w.T + b
    assert outl.shape == (5000, OUT_FEATURES)
    assert jnp.allclose(outl, refl, atol=1e-5, rtol=1e-5)

    print("KERNEL_OK")
</pallas_src>

<mosaic_0001>
module attributes {stable_mosaic.version = 11 : i64} {
  func.func @linear_kernel(%arg0: i32, %arg1: memref<8x3xf32, #tpu.memory_space<vmem>>, %arg2: memref<3xf32, #tpu.memory_space<smem>>, %arg3: memref<1xf32, #tpu.memory_space<smem>>, %arg4: memref<8x1xf32, #tpu.memory_space<vmem>>) attributes {dimension_semantics = [#tpu.dimension_semantics<parallel>], iteration_bounds = array<i64: 1>, scalar_prefetch = 0 : i64, scratch_operands = 0 : i64, tpu.core_type = #tpu.core_type<tc>, window_params = [{transform_indices = @transform_0, window_bounds = array<i64: 8, 3>}, {transform_indices = @transform_1, window_bounds = array<i64: 3>}, {transform_indices = @transform_2, window_bounds = array<i64: 1>}, {transform_indices = @transform_3, window_bounds = array<i64: 8, 1>}]} {
    %c0 = arith.constant 0 : index
    %c0_0 = arith.constant 0 : index
    %0 = vector.load %arg1[%c0, %c0_0] : memref<8x3xf32, #tpu.memory_space<vmem>>, vector<8x1xf32>
    %c0_1 = arith.constant 0 : index
    %c1 = arith.constant 1 : index
    %1 = vector.load %arg1[%c0_1, %c1] : memref<8x3xf32, #tpu.memory_space<vmem>>, vector<8x1xf32>
    %c0_2 = arith.constant 0 : index
    %c2 = arith.constant 2 : index
    %2 = vector.load %arg1[%c0_2, %c2] : memref<8x3xf32, #tpu.memory_space<vmem>>, vector<8x1xf32>
    %c0_3 = arith.constant 0 : index
    %3 = memref.load %arg2[%c0_3] : memref<3xf32, #tpu.memory_space<smem>>
    %4 = vector.broadcast %3 : f32 to vector<8x1xf32>
    %5 = arith.mulf %0, %4 : vector<8x1xf32>
    %c1_4 = arith.constant 1 : index
    %6 = memref.load %arg2[%c1_4] : memref<3xf32, #tpu.memory_space<smem>>
    %7 = vector.broadcast %6 : f32 to vector<8x1xf32>
    %8 = arith.mulf %1, %7 : vector<8x1xf32>
    %9 = arith.addf %5, %8 : vector<8x1xf32>
    %c2_5 = arith.constant 2 : index
    %10 = memref.load %arg2[%c2_5] : memref<3xf32, #tpu.memory_space<smem>>
    %11 = vector.broadcast %10 : f32 to vector<8x1xf32>
    %12 = arith.mulf %2, %11 : vector<8x1xf32>
    %13 = arith.addf %9, %12 : vector<8x1xf32>
    %c0_6 = arith.constant 0 : index
    %14 = memref.load %arg3[%c0_6] : memref<1xf32, #tpu.memory_space<smem>>
    %15 = vector.broadcast %14 : f32 to vector<8x1xf32>
    %16 = arith.addf %13, %15 : vector<8x1xf32>
    %c0_7 = arith.constant 0 : index
    %c0_8 = arith.constant 0 : index
    %17 = vector.load %arg4[%c0_7, %c0_8] : memref<8x1xf32, #tpu.memory_space<vmem>>, vector<8x1xf32>
    tpu.vector_store %arg4[%c0_7, %c0_8], %16 {strides = array<i32>} : memref<8x1xf32, #tpu.memory_space<vmem>>, vector<8x1xf32>,
    return
  }
  func.func @transform_0(%arg0: i32) -> (i32, i32) {
    %c0_i32 = arith.constant 0 : i32
    %c0_i32_0 = arith.constant 0 : i32
    return %arg0, %c0_i32 : i32, i32
  }
  func.func @transform_1(%arg0: i32) -> i32 {
    %c0_i32 = arith.constant 0 : i32
    %c0_i32_0 = arith.constant 0 : i32
    return %c0_i32 : i32
  }
  func.func @transform_2(%arg0: i32) -> i32 {
    %c0_i32 = arith.constant 0 : i32
    %c0_i32_0 = arith.constant 0 : i32
    return %c0_i32 : i32
  }
  func.func @transform_3(%arg0: i32) -> (i32, i32) {
    %c0_i32 = arith.constant 0 : i32
    %c0_i32_0 = arith.constant 0 : i32
    return %arg0, %c0_i32 : i32, i32
  }
}

</mosaic_0001>

<llo_original>
// kernel: linear_forward.1
$region0: #{linear_forward.1}
  #allocation0 [shape = 'u32[]', space=smem, size = 0x4, offset = 0x4, fixed_abs, tag = 'smem constant byte address 0x4 - core index']
  #allocation1 [shape = 'u32[72,128]{1,0:T(1,128)}', space=vmem, size = 0x9000, scoped, tag = 'internal scratch']
  #allocation2 [shape = 'f32[1]{0:T(128)S(6)}', space=smem, size = 0x200, scoped, tag = 'scoped memory for linear_forward.1']
  %s0 = inlined_call_operand.vmem [shape: f32[8,3], index: 0, kind: input, shape index: {}]
  %s1 = inlined_call_operand.vmem [shape: f32[3], index: 1, kind: input, shape index: {}]
  %s2 = inlined_call_operand.<no memory space> [shape: f32[1], index: 2, kind: input, shape index: {}]
  %s3 = inlined_call_operand.vmem [shape: f32[8,1], index: 3, kind: output, shape index: {}]
  %s4 = sld [smem:[#allocation0]]
  $region26: #{linear_forward.1} parent=0
    _
  %s6 = ssub.s32 1, %s4
  %s7 = scalar_select 0, %s6, %s4
  %8 = sst [smem:[#allocation2]] %s2
  $region1: #{linear_forward.1} parent=0
    #allocation3 [shape = 'u8[512]{0}', space=smem, size = 0x200, scoped, tag = 'input window, operand 1, single buffered']
    #allocation4 [shape = 's32[1]{0}', space=sflag, size = 0x4, scoped, tag = 'scoped memory for linear_forward.1']
    %9 = vsyncpa [#allocation4], 0
    // Predicated region
    $region2: #{linear_forward.1} parent=1 // pred_check
      _
    $region3: #{linear_forward.1} parent=1 // pred_check_branch
      %11 = sbr.rel (0) target = $region5
    $region4: #{linear_forward.1} parent=1 // pred_region
      _
    $region5: #{linear_forward.1} parent=1 // pred_fallthru
      _
    // Predicated region
    $region6: #{linear_forward.1} parent=1 // pred_check
      _
    $region7: #{linear_forward.1} parent=1 // pred_check_branch
      %13 = sbr.rel (0) target = $region9
    $region8: #{linear_forward.1} parent=1 // pred_region
      %15 = vsyncadd [#allocation4], 0
      %s17 = sshll.u32 %s1, 4
      %s18 = int_to_ptr.vmem [resolvable:$true] %s17
      %20 = dma.vmem_to_smem %s18, 16, [#allocation3], [#allocation4]
    $region9: #{linear_forward.1} parent=1 // pred_fallthru
      _
    // Predicated region
    $region10: #{linear_forward.1} parent=1 // pred_check
      _
    $region11: #{linear_forward.1} parent=1 // pred_check_branch
      %22 = sbr.rel (0) target = $region13
    $region12: #{linear_forward.1} parent=1 // pred_region
      _
    $region13: #{linear_forward.1} parent=1 // pred_fallthru
      _
    // Predicated region
    $region14: #{linear_forward.1} parent=1 // pred_check
      _
    $region15: #{linear_forward.1} parent=1 // pred_check_branch
      %24 = sbr.rel (0) target = $region17
    $region16: #{linear_forward.1} parent=1 // pred_region
      %26 = dma.done [#allocation4], 16
    $region17: #{linear_forward.1} parent=1 // pred_fallthru
      _
    %27 = sfence
    %v28 = vld [vmem:[%s0] sm:$0xff]
    %s29 = sld [smem:[#allocation3]]
    %v30 = vstv %s29
    %v31 = vmul.f32 %v28, %v30
    %s32 = sld [smem:[#allocation3 + $0x1]]
    %v33 = vstv %s32
    %v34 = vmul.f32 %v28, %v33
    %36 = vrot.lane.b32.xlu0 %v34, 127
    %v37 = vpop.permute.xlu0 %36
    %v39 = vadd.f32 %v31, %v37
    %s40 = sld [smem:[#allocation3 + $0x2]]
    %v41 = vstv %s40
    %v42 = vmul.f32 %v28, %v41
    %44 = vrot.lane.b32.xlu0 %v42, 126
    %v45 = vpop.permute.xlu0 %44
    %v47 = vadd.f32 %v39, %v45
    %s48 = sld [smem:[#allocation2]]
    %v49 = vstv %s48
    %v50 = vadd.f32 %v47, %v49
    %vm51 = vcmask 7168
    %52 = vst.msk [vmem:[%s3] sm:$0xff] %vm51, %v50
    // Predicated region
    $region18: #{linear_forward.1} parent=1 // pred_check
      _
    $region19: #{linear_forward.1} parent=1 // pred_check_branch
      %54 = sbr.rel (0) target = $region21
    $region20: #{linear_forward.1} parent=1 // pred_region
      _
    $region21: #{linear_forward.1} parent=1 // pred_fallthru
      _
    // Predicated region
    $region22: #{linear_forward.1} parent=1 // pred_check
      _
    $region23: #{linear_forward.1} parent=1 // pred_check_branch
      %56 = sbr.rel (0) target = $region25
    $region24: #{linear_forward.1} parent=1 // pred_region
      _
    $region25: #{linear_forward.1} parent=1 // pred_fallthru
      _
    %57 = vsyncpa [#allocation4], 1

</llo_original>
